<compile_context>
chip_gen: v5e
topology: v5e:2x2
jax: 0.10.0
libtpu: 0.0.40
codegen_flags: <defaults>
</compile_context>

<pallas_src>
import jax
import jax.numpy as jnp
from jax.experimental import pallas as pl
from jax.experimental.pallas import tpu as pltpu


def _fused_pointwise_conv_kernel(x_ref, w0_ref, b0_ref, wl_ref, bl_ref, o_ref):
    # x_ref:  (bt_tile, C_in, S)  -- channels on sublanes, spatial on lanes
    # w0_ref: (C_hid, C_in), b0_ref: (C_hid, 1)
    # wl_ref: (C_in, C_hid), bl_ref: (C_in, 1)
    # o_ref:  (bt_tile, C_in, S)
    w0 = w0_ref[...]
    b0 = b0_ref[...]
    wl = wl_ref[...]
    bl = bl_ref[...]
    for i in range(x_ref.shape[0]):  # static unroll over the B*T tile
        x = x_ref[i]                                                  # (C_in, S)
        # MetaBlock 0: MGMA block + 1x1x1 reduction conv (C_in -> C_hid).
        # TODO(synk): MGMABasicBlock / MGMABottleneckBlock / MGMAShuffleV2Block
        # source is not provided in the reference module; self.block stays identity.
        hid = jnp.dot(w0, x, preferred_element_type=jnp.float32) + b0  # (C_hid, S)
        # MetaBlocks 1..N2-2 are C_hid->C_hid (block-only -> identity stub, no reduction).
        # MetaBlock N2-1: 1x1x1 reduction conv (C_hid -> C_in).
        y = jnp.dot(wl, hid, preferred_element_type=jnp.float32) + bl  # (C_in, S)
        o_ref[i] = y.astype(o_ref.dtype)


def fused_channel_mixer(x3, w0, b0, wl, bl, *, bt_tile=4):
    """x3: (B*T, C_in, S) channels-on-sublanes / spatial-on-lanes view.

    Applies (wl @ (w0 @ x + b0) + bl) per voxel in a single fused Pallas kernel.
    """
    bt, c_in, s = x3.shape
    c_hid, c_in_w = w0.shape
    assert c_in_w == c_in and wl.shape == (c_in, c_hid)

    # Pick a B*T tile that (a) divides bt exactly (every block full, no reliance
    # on OOB-write masking) and (b) leaves >= 2 grid steps for the v7x megacore.
    bt_tile = max(1, min(bt_tile, bt))
    if bt >= 2:
        bt_tile = min(bt_tile, max(1, bt // 2))
    while bt % bt_tile:
        bt_tile -= 1
    grid = (bt // bt_tile,)

    return pl.pallas_call(
        _fused_pointwise_conv_kernel,
        out_shape=jax.ShapeDtypeStruct((bt, c_in, s), x3.dtype),
        grid=grid,
        in_specs=[
            pl.BlockSpec((bt_tile, c_in, s), lambda i: (i, 0, 0)),  # activations
            pl.BlockSpec((c_hid, c_in), lambda i: (0, 0)),          # w0 (VMEM-resident)
            pl.BlockSpec((c_hid, 1), lambda i: (0, 0)),             # b0
            pl.BlockSpec((c_in, c_hid), lambda i: (0, 0)),          # wl (VMEM-resident)
            pl.BlockSpec((c_in, 1), lambda i: (0, 0)),              # bl
        ],
        out_specs=pl.BlockSpec((bt_tile, c_in, s), lambda i: (i, 0, 0)),
        compiler_params=pltpu.CompilerParams(
            dimension_semantics=("parallel",)),
    )(x3, w0, b0.reshape(c_hid, 1), wl, bl.reshape(c_in, 1))


def init_midmetanet_params(key, channel_in, channel_hid):
    """Deterministic init matching MetaBlock.reduction (kaiming_normal_ fan_out/relu, zero bias).

    Weights kept in PyTorch Conv3d (out_channels, in_channels) layout.
    """
    k0, k1 = jax.random.split(key)
    std0 = (2.0 / channel_hid) ** 0.5          # fan_out = out_channels * 1*1*1
    w0 = std0 * jax.random.normal(k0, (channel_hid, channel_in), jnp.float32)
    b0 = jnp.zeros((channel_hid,), jnp.float32)
    stdl = (2.0 / channel_in) ** 0.5
    wl = stdl * jax.random.normal(k1, (channel_in, channel_hid), jnp.float32)
    bl = jnp.zeros((channel_in,), jnp.float32)
    return dict(w0=w0, b0=b0, wl=wl, bl=bl)


def midmetanet_forward(x, params, n2):
    """x: (B, T, C, H, W), same convention as the PyTorch MidMetaNet input.

    The PyTorch permutes to NCDHW and back are folded away: a kernel-size-1 Conv3d
    only mixes channels per voxel, so we operate directly on the native layout
    viewed as (B*T, C, H*W) — free reshapes, zero transposes, zero padding copies.
    """
    assert n2 >= 2
    b, t, c, h, w = x.shape
    x3 = x.reshape(b * t, c, h * w)
    y3 = fused_channel_mixer(x3, params["w0"], params["b0"],
                             params["wl"], params["bl"])
    return y3.reshape(b, t, c, h, w)


if __name__ == "__main__":
    key = jax.random.PRNGKey(0)
    kx, kp = jax.random.split(key)
    B, T, C_in, H, W = 2, 8, 4, 16, 16
    C_hid, N2 = 32, 3
    x = jax.random.normal(kx, (B, T, C_in, H, W), jnp.float32)
    params = init_midmetanet_params(kp, C_in, C_hid)

    y = midmetanet_forward(x, params, N2)
    y = jax.block_until_ready(y)
    assert y.shape == (B, T, C_in, H, W)
    assert y.dtype == jnp.float32

    # Pure-JAX reference of the same (identity-block-stubbed) forward pass.
    h_ref = jnp.einsum("oc,btchw->btohw", params["w0"], x) \
        + params["b0"][None, None, :, None, None]
    y_ref = jnp.einsum("oc,btchw->btohw", params["wl"], h_ref) \
        + params["bl"][None, None, :, None, None]
    assert jnp.allclose(y, y_ref, atol=5e-2, rtol=5e-2)

    print("KERNEL_OK")
</pallas_src>

<mosaic_0001>
module attributes {stable_mosaic.version = 11 : i64} {
  func.func @_fused_pointwise_conv_kernel(%arg0: i32, %arg1: memref<4x4x256xf32, #tpu.memory_space<vmem>>, %arg2: memref<32x4xf32, #tpu.memory_space<vmem>>, %arg3: memref<32x1xf32, #tpu.memory_space<vmem>>, %arg4: memref<4x32xf32, #tpu.memory_space<vmem>>, %arg5: memref<4x1xf32, #tpu.memory_space<vmem>>, %arg6: memref<4x4x256xf32, #tpu.memory_space<vmem>>) attributes {dimension_semantics = [#tpu.dimension_semantics<parallel>], iteration_bounds = array<i64: 4>, scalar_prefetch = 0 : i64, scratch_operands = 0 : i64, tpu.core_type = #tpu.core_type<tc>, window_params = [{transform_indices = @transform_0, window_bounds = array<i64: 4, 4, 256>}, {pipeline_mode = #tpu.pipeline_mode<synchronous>, transform_indices = @transform_1, window_bounds = array<i64: 32, 4>}, {pipeline_mode = #tpu.pipeline_mode<synchronous>, transform_indices = @transform_2, window_bounds = array<i64: 32, 1>}, {pipeline_mode = #tpu.pipeline_mode<synchronous>, transform_indices = @transform_3, window_bounds = array<i64: 4, 32>}, {pipeline_mode = #tpu.pipeline_mode<synchronous>, transform_indices = @transform_4, window_bounds = array<i64: 4, 1>}, {transform_indices = @transform_5, window_bounds = array<i64: 4, 4, 256>}]} {
    %c0 = arith.constant 0 : index
    %c0_0 = arith.constant 0 : index
    %0 = vector.load %arg2[%c0, %c0_0] : memref<32x4xf32, #tpu.memory_space<vmem>>, vector<32x4xf32>
    %c0_1 = arith.constant 0 : index
    %c0_2 = arith.constant 0 : index
    %1 = vector.load %arg3[%c0_1, %c0_2] : memref<32x1xf32, #tpu.memory_space<vmem>>, vector<32x1xf32>
    %c0_3 = arith.constant 0 : index
    %c0_4 = arith.constant 0 : index
    %2 = vector.load %arg4[%c0_3, %c0_4] : memref<4x32xf32, #tpu.memory_space<vmem>>, vector<4x32xf32>
    %c0_5 = arith.constant 0 : index
    %c0_6 = arith.constant 0 : index
    %3 = vector.load %arg5[%c0_5, %c0_6] : memref<4x1xf32, #tpu.memory_space<vmem>>, vector<4x1xf32>
    %c0_7 = arith.constant 0 : index
    %c0_8 = arith.constant 0 : index
    %c0_9 = arith.constant 0 : index
    %4 = vector.load %arg1[%c0_7, %c0_8, %c0_9] : memref<4x4x256xf32, #tpu.memory_space<vmem>>, vector<1x4x256xf32>
    %5 = vector.shape_cast %4 : vector<1x4x256xf32> to vector<4x256xf32>
    %cst = arith.constant dense<0.000000e+00> : vector<32x256xf32>
    %6 = tpu.matmul %0, %5, %cst {dimension_numbers = #tpu.dot_dimension_numbers<[1], [0], [0], [1], [0, 0, 1, 1], [], []>} : vector<32x4xf32>, vector<4x256xf32>, vector<32x256xf32> -> vector<32x256xf32>
    %7 = vector.broadcast %1 : vector<32x1xf32> to vector<32x256xf32>
    %8 = arith.addf %6, %7 : vector<32x256xf32>
    %cst_10 = arith.constant dense<0.000000e+00> : vector<4x256xf32>
    %9 = tpu.matmul %2, %8, %cst_10 {dimension_numbers = #tpu.dot_dimension_numbers<[1], [0], [0], [1], [0, 0, 1, 1], [], []>} : vector<4x32xf32>, vector<32x256xf32>, vector<4x256xf32> -> vector<4x256xf32>
    %10 = vector.broadcast %3 : vector<4x1xf32> to vector<4x256xf32>
    %11 = arith.addf %9, %10 : vector<4x256xf32>
    %c0_11 = arith.constant 0 : index
    %c0_12 = arith.constant 0 : index
    %c0_13 = arith.constant 0 : index
    %12 = vector.load %arg6[%c0_11, %c0_12, %c0_13] : memref<4x4x256xf32, #tpu.memory_space<vmem>>, vector<1x4x256xf32>
    %13 = vector.shape_cast %12 : vector<1x4x256xf32> to vector<4x256xf32>
    %14 = vector.shape_cast %11 : vector<4x256xf32> to vector<1x4x256xf32>
    tpu.vector_store %arg6[%c0_11, %c0_12, %c0_13], %14 {strides = array<i32>} : memref<4x4x256xf32, #tpu.memory_space<vmem>>, vector<1x4x256xf32>,
    %c1 = arith.constant 1 : index
    %c0_14 = arith.constant 0 : index
    %c0_15 = arith.constant 0 : index
    %15 = vector.load %arg1[%c1, %c0_14, %c0_15] : memref<4x4x256xf32, #tpu.memory_space<vmem>>, vector<1x4x256xf32>
    %16 = vector.shape_cast %15 : vector<1x4x256xf32> to vector<4x256xf32>
    %cst_16 = arith.constant dense<0.000000e+00> : vector<32x256xf32>
    %17 = tpu.matmul %0, %16, %cst_16 {dimension_numbers = #tpu.dot_dimension_numbers<[1], [0], [0], [1], [0, 0, 1, 1], [], []>} : vector<32x4xf32>, vector<4x256xf32>, vector<32x256xf32> -> vector<32x256xf32>
    %18 = vector.broadcast %1 : vector<32x1xf32> to vector<32x256xf32>
    %19 = arith.addf %17, %18 : vector<32x256xf32>
    %cst_17 = arith.constant dense<0.000000e+00> : vector<4x256xf32>
    %20 = tpu.matmul %2, %19, %cst_17 {dimension_numbers = #tpu.dot_dimension_numbers<[1], [0], [0], [1], [0, 0, 1, 1], [], []>} : vector<4x32xf32>, vector<32x256xf32>, vector<4x256xf32> -> vector<4x256xf32>
    %21 = vector.broadcast %3 : vector<4x1xf32> to vector<4x256xf32>
    %22 = arith.addf %20, %21 : vector<4x256xf32>
    %c1_18 = arith.constant 1 : index
    %c0_19 = arith.constant 0 : index
    %c0_20 = arith.constant 0 : index
    %23 = vector.load %arg6[%c1_18, %c0_19, %c0_20] : memref<4x4x256xf32, #tpu.memory_space<vmem>>, vector<1x4x256xf32>
    %24 = vector.shape_cast %23 : vector<1x4x256xf32> to vector<4x256xf32>
    %25 = vector.shape_cast %22 : vector<4x256xf32> to vector<1x4x256xf32>
    tpu.vector_store %arg6[%c1_18, %c0_19, %c0_20], %25 {strides = array<i32>} : memref<4x4x256xf32, #tpu.memory_space<vmem>>, vector<1x4x256xf32>,
    %c2 = arith.constant 2 : index
    %c0_21 = arith.constant 0 : index
    %c0_22 = arith.constant 0 : index
    %26 = vector.load %arg1[%c2, %c0_21, %c0_22] : memref<4x4x256xf32, #tpu.memory_space<vmem>>, vector<1x4x256xf32>
    %27 = vector.shape_cast %26 : vector<1x4x256xf32> to vector<4x256xf32>
    %cst_23 = arith.constant dense<0.000000e+00> : vector<32x256xf32>
    %28 = tpu.matmul %0, %27, %cst_23 {dimension_numbers = #tpu.dot_dimension_numbers<[1], [0], [0], [1], [0, 0, 1, 1], [], []>} : vector<32x4xf32>, vector<4x256xf32>, vector<32x256xf32> -> vector<32x256xf32>
    %29 = vector.broadcast %1 : vector<32x1xf32> to vector<32x256xf32>
    %30 = arith.addf %28, %29 : vector<32x256xf32>
    %cst_24 = arith.constant dense<0.000000e+00> : vector<4x256xf32>
    %31 = tpu.matmul %2, %30, %cst_24 {dimension_numbers = #tpu.dot_dimension_numbers<[1], [0], [0], [1], [0, 0, 1, 1], [], []>} : vector<4x32xf32>, vector<32x256xf32>, vector<4x256xf32> -> vector<4x256xf32>
    %32 = vector.broadcast %3 : vector<4x1xf32> to vector<4x256xf32>
    %33 = arith.addf %31, %32 : vector<4x256xf32>
    %c2_25 = arith.constant 2 : index
    %c0_26 = arith.constant 0 : index
    %c0_27 = arith.constant 0 : index
    %34 = vector.load %arg6[%c2_25, %c0_26, %c0_27] : memref<4x4x256xf32, #tpu.memory_space<vmem>>, vector<1x4x256xf32>
    %35 = vector.shape_cast %34 : vector<1x4x256xf32> to vector<4x256xf32>
    %36 = vector.shape_cast %33 : vector<4x256xf32> to vector<1x4x256xf32>
    tpu.vector_store %arg6[%c2_25, %c0_26, %c0_27], %36 {strides = array<i32>} : memref<4x4x256xf32, #tpu.memory_space<vmem>>, vector<1x4x256xf32>,
    %c3 = arith.constant 3 : index
    %c0_28 = arith.constant 0 : index
    %c0_29 = arith.constant 0 : index
    %37 = vector.load %arg1[%c3, %c0_28, %c0_29] : memref<4x4x256xf32, #tpu.memory_space<vmem>>, vector<1x4x256xf32>
    %38 = vector.shape_cast %37 : vector<1x4x256xf32> to vector<4x256xf32>
    %cst_30 = arith.constant dense<0.000000e+00> : vector<32x256xf32>
    %39 = tpu.matmul %0, %38, %cst_30 {dimension_numbers = #tpu.dot_dimension_numbers<[1], [0], [0], [1], [0, 0, 1, 1], [], []>} : vector<32x4xf32>, vector<4x256xf32>, vector<32x256xf32> -> vector<32x256xf32>
    %40 = vector.broadcast %1 : vector<32x1xf32> to vector<32x256xf32>
    %41 = arith.addf %39, %40 : vector<32x256xf32>
    %cst_31 = arith.constant dense<0.000000e+00> : vector<4x256xf32>
    %42 = tpu.matmul %2, %41, %cst_31 {dimension_numbers = #tpu.dot_dimension_numbers<[1], [0], [0], [1], [0, 0, 1, 1], [], []>} : vector<4x32xf32>, vector<32x256xf32>, vector<4x256xf32> -> vector<4x256xf32>
    %43 = vector.broadcast %3 : vector<4x1xf32> to vector<4x256xf32>
    %44 = arith.addf %42, %43 : vector<4x256xf32>
    %c3_32 = arith.constant 3 : index
    %c0_33 = arith.constant 0 : index
    %c0_34 = arith.constant 0 : index
    %45 = vector.load %arg6[%c3_32, %c0_33, %c0_34] : memref<4x4x256xf32, #tpu.memory_space<vmem>>, vector<1x4x256xf32>
    %46 = vector.shape_cast %45 : vector<1x4x256xf32> to vector<4x256xf32>
    %47 = vector.shape_cast %44 : vector<4x256xf32> to vector<1x4x256xf32>
    tpu.vector_store %arg6[%c3_32, %c0_33, %c0_34], %47 {strides = array<i32>} : memref<4x4x256xf32, #tpu.memory_space<vmem>>, vector<1x4x256xf32>,
    return
  }
  func.func @transform_0(%arg0: i32) -> (i32, i32, i32) {
    %c0_i32 = arith.constant 0 : i32
    %c0_i32_0 = arith.constant 0 : i32
    %c0_i32_1 = arith.constant 0 : i32
    return %arg0, %c0_i32, %c0_i32_0 : i32, i32, i32
  }
  func.func @transform_1(%arg0: i32) -> (i32, i32) {
    %c0_i32 = arith.constant 0 : i32
    %c0_i32_0 = arith.constant 0 : i32
    %c0_i32_1 = arith.constant 0 : i32
    return %c0_i32, %c0_i32_0 : i32, i32
  }
  func.func @transform_2(%arg0: i32) -> (i32, i32) {
    %c0_i32 = arith.constant 0 : i32
    %c0_i32_0 = arith.constant 0 : i32
    %c0_i32_1 = arith.constant 0 : i32
    return %c0_i32, %c0_i32_0 : i32, i32
  }
  func.func @transform_3(%arg0: i32) -> (i32, i32) {
    %c0_i32 = arith.constant 0 : i32
    %c0_i32_0 = arith.constant 0 : i32
    %c0_i32_1 = arith.constant 0 : i32
    return %c0_i32, %c0_i32_0 : i32, i32
  }
  func.func @transform_4(%arg0: i32) -> (i32, i32) {
    %c0_i32 = arith.constant 0 : i32
    %c0_i32_0 = arith.constant 0 : i32
    %c0_i32_1 = arith.constant 0 : i32
    return %c0_i32, %c0_i32_0 : i32, i32
  }
  func.func @transform_5(%arg0: i32) -> (i32, i32, i32) {
    %c0_i32 = arith.constant 0 : i32
    %c0_i32_0 = arith.constant 0 : i32
    %c0_i32_1 = arith.constant 0 : i32
    return %arg0, %c0_i32, %c0_i32_0 : i32, i32, i32
  }
}

</mosaic_0001>

<llo_original>
// kernel: tpu_custom_call.1
$region0: #{tpu_custom_call.1}
  #allocation0 [shape = 'u32[]', space=smem, size = 0x4, offset = 0x4, fixed_abs, tag = 'smem constant byte address 0x4 - core index']
  #allocation1 [shape = 'u32[72,128]{1,0:T(1,128)}', space=vmem, size = 0x9000, scoped, tag = 'internal scratch']
  %s0 = inlined_call_operand.hbm [shape: f32[16,4,256], index: 0, kind: input, shape index: {}]
  %s1 = inlined_call_operand.vmem [shape: f32[32,4], index: 1, kind: input, shape index: {}]
  %s2 = inlined_call_operand.vmem [shape: f32[32,1], index: 2, kind: input, shape index: {}]
  %s3 = inlined_call_operand.vmem [shape: f32[4,32], index: 3, kind: input, shape index: {}]
  %s4 = inlined_call_operand.vmem [shape: f32[4,1], index: 4, kind: input, shape index: {}]
  %s5 = inlined_call_operand.hbm [shape: f32[16,4,256], index: 5, kind: output, shape index: {}]
  %s6 = sld [smem:[#allocation0]]
  $region57: #{tpu_custom_call.1} parent=0
    _
  %s8 = ssub.s32 1, %s6
  %s9 = scalar_select 0, %s8, %s6
  $region1: #{tpu_custom_call.1} parent=0
    #allocation2 [shape = 'u8[32768]{0}', space=vmem, size = 0x8000, scoped, tag = 'input window, operand 0']
    #allocation3 [shape = 's32[2]{0}', space=sflag, size = 0x8, scoped, tag = 'scoped memory for tpu_custom_call.1']
    #allocation4 [shape = 's32[2]{0}', space=sflag, size = 0x8, scoped, tag = 'scoped memory for tpu_custom_call.1']
    #allocation5 [shape = 'u8[32768]{0}', space=vmem, size = 0x8000, scoped, tag = 'output window, operand 0']
    %10 = vsyncpa [#allocation3], 0
    %s11 = scalar_lea.sflag [#allocation3], 1
    %12 = vsyncpa %s11, 0
    %13 = vsyncpa [#allocation4], 0
    %s14 = scalar_lea.sflag [#allocation4], 1
    %15 = vsyncpa %s14, 0
    loop: start=0, step=1, limit=6
    $region2: #{tpu_custom_call.1} parent=1 // loop_pre_header
      _
    $region3: #{tpu_custom_call.1} parent=1 // loop_header
      %s17 = sphi 0, %s21
      %p18 = scmp.ge.s32.totalorder %s17, 6
      %s27 = sphi 0, %s29
      %s30 = sphi 0, %s27
      %s31 = sphi 0, %s30
      %s47 = sphi 0, %s31
      %s51 = sphi 0, %s51
      %s53 = sphi 0, %s51
      %s54 = sphi 0, %s53
      %s68 = sphi 0, %s54
      %s72 = sphi 0, %s72
      %s74 = sphi 0, %s72
      %s75 = sphi 0, %s74
      %s89 = sphi 0, %s75
      %s93 = sphi 0, %s93
      %s95 = sphi 0, %s93
      %s96 = sphi 0, %s95
      %s110 = sphi 0, %s96
      %s114 = sphi 0, %s114
      %s116 = sphi 0, %s114
      %s117 = sphi 0, %s116
      %s131 = sphi 0, %s117
      %s137 = sphi 0, %s139
      %s140 = sphi 0, %s137
      %s141 = sphi 0, %s140
      %s157 = sphi 0, %s141
    $region4: #{tpu_custom_call.1} parent=1 // loop_header_branch
      %20 = sbr.rel (%p18) target = $region8
    $region5: #{tpu_custom_call.1} parent=1 // loop_body
      %s22 = ssub.s32 %s17, 1
      %s23 = ssub.s32 %s17, 2
      %s24 = sadd.s32 %s17, 1
      %s25 = ssub.s32 %s17, %s24
      %p26 = scmp.eq.s32.totalorder %s25, 0
      %s28 = sadd.s32 %s27, 1
      %s29 = scalar_select %p26, %s27, %s28
      %p32 = pneg %p26
      %p33 = scmp.eq.s32.totalorder %s17, 3
      %p34 = por %p32, %p33
      %p35 = scmp.ne.s32.totalorder %s27, %s30
      %p36 = scmp.eq.s32.totalorder %s17, 0
      %p37 = por %p35, %p36
      %p38 = scmp.ne.s32.totalorder %s27, %s30
      %p39 = scmp.eq.s32.totalorder %s22, 3
      %p40 = por %p38, %p39
      %p41 = scmp.ne.s32.totalorder %s30, %s31
      %p42 = scmp.eq.s32.totalorder %s22, 0
      %p43 = por %p41, %p42
      %p44 = scmp.ne.s32.totalorder %s30, %s31
      %p45 = scmp.eq.s32.totalorder %s23, 3
      %p46 = por %p44, %p45
      %p48 = scmp.ne.s32.totalorder %s31, %s47
      %p49 = scmp.eq.s32.totalorder %s23, 0
      %p50 = por %p48, %p49
      %s52 = sadd.s32 %s51, 1
      %p55 = scmp.eq.s32.totalorder %s17, 3
      %p56 = scmp.ne.s32.totalorder %s51, %s53
      %p57 = scmp.eq.s32.totalorder %s17, 0
      %p58 = por %p56, %p57
      %p59 = scmp.ne.s32.totalorder %s51, %s53
      %p60 = scmp.eq.s32.totalorder %s22, 3
      %p61 = por %p59, %p60
      %p62 = scmp.ne.s32.totalorder %s53, %s54
      %p63 = scmp.eq.s32.totalorder %s22, 0
      %p64 = por %p62, %p63
      %p65 = scmp.ne.s32.totalorder %s53, %s54
      %p66 = scmp.eq.s32.totalorder %s23, 3
      %p67 = por %p65, %p66
      %p69 = scmp.ne.s32.totalorder %s54, %s68
      %p70 = scmp.eq.s32.totalorder %s23, 0
      %p71 = por %p69, %p70
      %s73 = sadd.s32 %s72, 1
      %p76 = scmp.eq.s32.totalorder %s17, 3
      %p77 = scmp.ne.s32.totalorder %s72, %s74
      %p78 = scmp.eq.s32.totalorder %s17, 0
      %p79 = por %p77, %p78
      %p80 = scmp.ne.s32.totalorder %s72, %s74
      %p81 = scmp.eq.s32.totalorder %s22, 3
      %p82 = por %p80, %p81
      %p83 = scmp.ne.s32.totalorder %s74, %s75
      %p84 = scmp.eq.s32.totalorder %s22, 0
      %p85 = por %p83, %p84
      %p86 = scmp.ne.s32.totalorder %s74, %s75
      %p87 = scmp.eq.s32.totalorder %s23, 3
      %p88 = por %p86, %p87
      %p90 = scmp.ne.s32.totalorder %s75, %s89
      %p91 = scmp.eq.s32.totalorder %s23, 0
      %p92 = por %p90, %p91
      %s94 = sadd.s32 %s93, 1
      %p97 = scmp.eq.s32.totalorder %s17, 3
      %p98 = scmp.ne.s32.totalorder %s93, %s95
      %p99 = scmp.eq.s32.totalorder %s17, 0
      %p100 = por %p98, %p99
      %p101 = scmp.ne.s32.totalorder %s93, %s95
      %p102 = scmp.eq.s32.totalorder %s22, 3
      %p103 = por %p101, %p102
      %p104 = scmp.ne.s32.totalorder %s95, %s96
      %p105 = scmp.eq.s32.totalorder %s22, 0
      %p106 = por %p104, %p105
      %p107 = scmp.ne.s32.totalorder %s95, %s96
      %p108 = scmp.eq.s32.totalorder %s23, 3
      %p109 = por %p107, %p108
      %p111 = scmp.ne.s32.totalorder %s96, %s110
      %p112 = scmp.eq.s32.totalorder %s23, 0
      %p113 = por %p111, %p112
      %s115 = sadd.s32 %s114, 1
      %p118 = scmp.eq.s32.totalorder %s17, 3
      %p119 = scmp.ne.s32.totalorder %s114, %s116
      %p120 = scmp.eq.s32.totalorder %s17, 0
      %p121 = por %p119, %p120
      %p122 = scmp.ne.s32.totalorder %s114, %s116
      %p123 = scmp.eq.s32.totalorder %s22, 3
      %p124 = por %p122, %p123
      %p125 = scmp.ne.s32.totalorder %s116, %s117
      %p126 = scmp.eq.s32.totalorder %s22, 0
      %p127 = por %p125, %p126
      %p128 = scmp.ne.s32.totalorder %s116, %s117
      %p129 = scmp.eq.s32.totalorder %s23, 3
      %p130 = por %p128, %p129
      %p132 = scmp.ne.s32.totalorder %s117, %s131
      %p133 = scmp.eq.s32.totalorder %s23, 0
      %p134 = por %p132, %p133
      %s135 = ssub.s32 %s17, %s24
      %p136 = scmp.eq.s32.totalorder %s135, 0
      %s138 = sadd.s32 %s137, 1
      %s139 = scalar_select %p136, %s137, %s138
      %p142 = pneg %p136
      %p143 = scmp.eq.s32.totalorder %s17, 3
      %p144 = por %p142, %p143
      %p145 = scmp.ne.s32.totalorder %s137, %s140
      %p146 = scmp.eq.s32.totalorder %s17, 0
      %p147 = por %p145, %p146
      %p148 = scmp.ne.s32.totalorder %s137, %s140
      %p149 = scmp.eq.s32.totalorder %s22, 3
      %p150 = por %p148, %p149
      %p151 = scmp.ne.s32.totalorder %s140, %s141
      %p152 = scmp.eq.s32.totalorder %s22, 0
      %p153 = por %p151, %p152
      %p154 = scmp.ne.s32.totalorder %s140, %s141
      %p155 = scmp.eq.s32.totalorder %s23, 3
      %p156 = por %p154, %p155
      %p158 = scmp.ne.s32.totalorder %s141, %s157
      %p159 = scmp.eq.s32.totalorder %s23, 0
      %p160 = por %p158, %p159
      %p161 = scmp.le.s32.totalorder 1, %s17
      %p162 = scmp.lt.s32.totalorder %s17, 5
      %p163 = pnand %p161, %p162
      %p164 = pneg %p163
      // Predicated region
      $region9: #{tpu_custom_call.1} parent=5 // pred_check
        _
      $region10: #{tpu_custom_call.1} parent=5 // pred_check_branch
        %166 = sbr.rel (%p163) target = $region12
      $region11: #{tpu_custom_call.1} parent=5 // pred_region
        %s167 = ssub.s32 %s17, 1
        // Predicated region
        $region13: #{tpu_custom_call.1} parent=11 // pred_check
          %p168 = pneg %p64
        $region14: #{tpu_custom_call.1} parent=11 // pred_check_branch
          %170 = sbr.rel (%p168) target = $region16
        $region15: #{tpu_custom_call.1} parent=11 // pred_region
          _
        $region16: #{tpu_custom_call.1} parent=11 // pred_fallthru
          _
        // Predicated region
        $region17: #{tpu_custom_call.1} parent=11 // pred_check
          %p171 = pneg %p85
        $region18: #{tpu_custom_call.1} parent=11 // pred_check_branch
          %173 = sbr.rel (%p171) target = $region20
        $region19: #{tpu_custom_call.1} parent=11 // pred_region
          _
        $region20: #{tpu_custom_call.1} parent=11 // pred_fallthru
          _
        // Predicated region
        $region21: #{tpu_custom_call.1} parent=11 // pred_check
          %p174 = pneg %p106
        $region22: #{tpu_custom_call.1} parent=11 // pred_check_branch
          %176 = sbr.rel (%p174) target = $region24
        $region23: #{tpu_custom_call.1} parent=11 // pred_region
          _
        $region24: #{tpu_custom_call.1} parent=11 // pred_fallthru
          _
        // Predicated region
        $region25: #{tpu_custom_call.1} parent=11 // pred_check
          %p177 = pneg %p127
        $region26: #{tpu_custom_call.1} parent=11 // pred_check_branch
          %179 = sbr.rel (%p177) target = $region28
        $region27: #{tpu_custom_call.1} parent=11 // pred_region
          _
        $region28: #{tpu_custom_call.1} parent=11 // pred_fallthru
          _
      $region12: #{tpu_custom_call.1} parent=5 // pred_fallthru
        _
      %p180 = scmp.lt.s32.totalorder %s17, 4
      // Predicated region
      $region29: #{tpu_custom_call.1} parent=5 // pred_check
        %p181 = pneg %p180
      $region30: #{tpu_custom_call.1} parent=5 // pred_check_branch
        %183 = sbr.rel (%p181) target = $region32
      $region31: #{tpu_custom_call.1} parent=5 // pred_region
        // Predicated region
        $region33: #{tpu_custom_call.1} parent=31 // pred_check
          %p184 = pneg %p37
        $region34: #{tpu_custom_call.1} parent=31 // pred_check_branch
          %186 = sbr.rel (%p184) target = $region36
        $region35: #{tpu_custom_call.1} parent=31 // pred_region
          %s187 = sand.u32 %s27, 1
          %s188 = scalar_lea.sflag [#allocation3], %s187
          %s189 = sand.u32 %s27, 1
          %s190 = smul.addr %s189, 32
          %s191 = scalar_lea.vmem [#allocation2], %s190
          %s192 = smul.u32 4, %s17
          %194 = vsyncadd %s188, 0
          %s195 = smul.addr %s192, 2
          %s196 = smul.addr %s195, 4
          %s197 = scalar_lea.hbm %s0, %s196
          %s198 = sshll.u32 %s197, 4
          %s199 = int_to_ptr.hbm [resolvable:$true] %s198
          %s200 = sshll.u32 %s191, 4
          %s201 = int_to_ptr.vmem [resolvable:$true] %s200
          %206 = dma.hbm_to_vmem [thread:$0]  %s199, 512, %s201, %s188, 128, 128, 8
        $region36: #{tpu_custom_call.1} parent=31 // pred_fallthru
          _
      $region32: #{tpu_custom_call.1} parent=5 // pred_fallthru
        _
      %p207 = scmp.le.s32.totalorder 1, %s17
      %p208 = scmp.lt.s32.totalorder %s17, 5
      %p209 = pnand %p207, %p208
      %p210 = pneg %p209
      // Predicated region
      $region37: #{tpu_custom_call.1} parent=5 // pred_check
        _
      $region38: #{tpu_custom_call.1} parent=5 // pred_check_branch
        %212 = sbr.rel (%p209) target = $region40
      $region39: #{tpu_custom_call.1} parent=5 // pred_region
        %s213 = ssub.s32 %s17, 1
        %s214 = sand.u32 %s30, 1
        %s215 = scalar_lea.sflag [#allocation3], %s214
        %s216 = sand.u32 %s30, 1
        %s217 = smul.addr %s216, 32
        %s218 = scalar_lea.vmem [#allocation2], %s217
        // Predicated region
        $region41: #{tpu_custom_call.1} parent=39 // pred_check
          %p219 = pneg %p43
        $region42: #{tpu_custom_call.1} parent=39 // pred_check_branch
          %221 = sbr.rel (%p219) target = $region44
        $region43: #{tpu_custom_call.1} parent=39 // pred_region
          %223 = dma.done %s215, 512
        $region44: #{tpu_custom_call.1} parent=39 // pred_fallthru
          _
        %s224 = sand.u32 %s30, 1
        %s225 = scalar_lea.sflag [#allocation3], %s224
        %s226 = sand.u32 %s30, 1
        %s227 = smul.addr %s226, 32
        %s228 = scalar_lea.vmem [#allocation2], %s227
        %p229 = pneg %p43
        %p230 = pneg %p40
        %p231 = pneg %p64
        %p232 = pneg %p61
        %p233 = pneg %p85
        %p234 = pneg %p82
        %p235 = pneg %p106
        %p236 = pneg %p103
        %p237 = pneg %p127
        %p238 = pneg %p124
        %p239 = pneg %p153
        %p240 = pneg %p150
        %s241 = sand.u32 %s140, 1
        %s242 = scalar_lea.sflag [#allocation4], %s241
        %s243 = sand.u32 %s140, 1
        %s244 = smul.addr %s243, 32
        %s245 = scalar_lea.vmem [#allocation5], %s244
        %s246 = smul.u32 4, %s22
        %s247 = smul.u32 4, %s22
        %v248 = vld [vmem:[%s1] sm:$0xff]
        %v249 = vld [vmem:[%s1 + $0x8] sm:$0xff]
        %v250 = vld [vmem:[%s1 + $0x10] sm:$0xff]
        %v251 = vld [vmem:[%s1 + $0x18] sm:$0xff]
        %v252 = vld [vmem:[%s2] sm:$0xff]
        %v253 = vld [vmem:[%s2 + $0x8] sm:$0xff]
        %v254 = vld [vmem:[%s2 + $0x10] sm:$0xff]
        %v255 = vld [vmem:[%s2 + $0x18] sm:$0xff]
        %v256 = vld [vmem:[%s3] sm:$0xf]
        %v257 = vld [vmem:[%s4] sm:$0xf]
        %v258 = vld [vmem:[%s218] sm:$0xff]
        %260 = vset.pattern.permute.xlu0 0
        %261 = vperm.xlu0 %260, %v252
        %v262 = vpop.permute.xlu0 %261
        %265 = vset.pattern.permute.xlu0 0
        %266 = vperm.xlu0 %265, %v253
        %v267 = vpop.permute.xlu0 %266
        %270 = vset.pattern.permute.xlu0 0
        %271 = vperm.xlu0 %270, %v254
        %v272 = vpop.permute.xlu0 %271
        %275 = vset.pattern.permute.xlu0 0
        %276 = vperm.xlu0 %275, %v255
        %v277 = vpop.permute.xlu0 %276
        %280 = vst [vmem:[#allocation1] ss:$2 sm:$0xff] %v258
        %v281 = vld.sshfl [vmem:[#allocation1] sm:$0xff pattern:$0x75316420]
        %v282 = vld.sshfl [vmem:[#allocation1 + $0x8] sm:$0xff pattern:$0x75316420]
        %vm283 = vcmask 31744
        %v285 = vsel %vm283, %v248, 0
        %v288 = vsel %vm283, %v249, 0
        %v291 = vsel %vm283, %v250, 0
        %v294 = vsel %vm283, %v251, 0
        %vm296 = vcmask 1043456
        %v297 = vsel %vm296, %v281, 0
        %v299 = vsel %vm296, %v282, 0
        %301 = vmatpush.msra.mxu0 0.0
        %302 = vmatpush.msra.mxu0 0.0
        %303 = vmatpush.msra.mxu0 0.0
        %304 = vmatpush.msra.mxu0 0.0
        %305 = vmatpush.msra.mxu0 0.0
        %306 = vmatpush.msra.mxu0 0.0
        %307 = vmatpush.msra.mxu0 0.0
        %308 = vmatpush.msra.mxu0 0.0
        %309 = vmatpush.msra.mxu0 0.0
        %310 = vmatpush.msra.mxu0 0.0
        %311 = vmatpush.msra.mxu0 0.0
        %312 = vmatpush.msra.mxu0 0.0
        %313 = vmatpush.msra.mxu0 0.0
        %314 = vmatpush.msra.mxu0 0.0
        %315 = vmatpush.msra.mxu0 0.0
        %316 = vmatpush.msra.mxu0 %v297
        %317 = vmatmul.f32.gmra.mxu0 %v285
        %v318 = vpop.f32.mrf.mxu0
        %v319 = vadd.f32 %v262, %v318
        %320 = vmatmul.f32.gmra.mxu0 %v288
        %v321 = vpop.f32.mrf.mxu0
        %v322 = vadd.f32 %v267, %v321
        %323 = vmatmul.f32.gmra.mxu0 %v291
        %v324 = vpop.f32.mrf.mxu0
        %v325 = vadd.f32 %v272, %v324
        %326 = vmatmul.f32.gmra.mxu0 %v294
        %v327 = vpop.f32.mrf.mxu0
        %v328 = vadd.f32 %v277, %v327
        %329 = vdwg.mxu0
        %330 = vmatpush.msra.mxu0 0.0
        %331 = vmatpush.msra.mxu0 0.0
        %332 = vmatpush.msra.mxu0 0.0
        %333 = vmatpush.msra.mxu0 0.0
        %334 = vmatpush.msra.mxu0 0.0
        %335 = vmatpush.msra.mxu0 0.0
        %336 = vmatpush.msra.mxu0 0.0
        %337 = vmatpush.msra.mxu0 0.0
        %338 = vmatpush.msra.mxu0 0.0
        %339 = vmatpush.msra.mxu0 0.0
        %340 = vmatpush.msra.mxu0 0.0
        %341 = vmatpush.msra.mxu0 0.0
        %342 = vmatpush.msra.mxu0 0.0
        %343 = vmatpush.msra.mxu0 0.0
        %344 = vmatpush.msra.mxu0 0.0
        %345 = vmatpush.msra.mxu0 %v299
        %346 = vmatmul.f32.gmra.mxu0 %v285
        %v347 = vpop.f32.mrf.mxu0
        %v348 = vadd.f32 %v262, %v347
        %349 = vmatmul.f32.gmra.mxu0 %v288
        %v350 = vpop.f32.mrf.mxu0
        %v351 = vadd.f32 %v267, %v350
        %352 = vmatmul.f32.gmra.mxu0 %v291
        %v353 = vpop.f32.mrf.mxu0
        %v354 = vadd.f32 %v272, %v353
        %355 = vmatmul.f32.gmra.mxu0 %v294
        %v356 = vpop.f32.mrf.mxu0
        %v357 = vadd.f32 %v277, %v356
        %358 = vdwg.mxu0
        %360 = vset.pattern.permute.xlu0 0
        %361 = vperm.xlu0 %360, %v257
        %v362 = vpop.permute.xlu0 %361
        %vm364 = vcmask 261120
        %v366 = vsel %vm364, %v256, 0
        %368 = vmatpush.msra.mxu0 0.0
        %369 = vmatpush.msra.mxu0 0.0
        %370 = vmatpush.msra.mxu0 0.0
        %371 = vmatpush.msra.mxu0 0.0
        %372 = vmatpush.msra.mxu0 0.0
        %373 = vmatpush.msra.mxu0 0.0
        %374 = vmatpush.msra.mxu0 0.0
        %375 = vmatpush.msra.mxu0 0.0
        %376 = vmatpush.msra.mxu0 0.0
        %377 = vmatpush.msra.mxu0 0.0
        %378 = vmatpush.msra.mxu0 0.0
        %379 = vmatpush.msra.mxu0 0.0
        %380 = vmatpush.msra.mxu0 %v328
        %381 = vmatpush.msra.mxu0 %v325
        %382 = vmatpush.msra.mxu0 %v322
        %383 = vmatpush.msra.mxu0 %v319
        %384 = vmatmul.f32.gmra.mxu0 %v366
        %v385 = vpop.f32.mrf.mxu0
        %v386 = vadd.f32 %v362, %v385
        %387 = vdwg.mxu0
        %388 = vmatpush.msra.mxu0 0.0
        %389 = vmatpush.msra.mxu0 0.0
        %390 = vmatpush.msra.mxu0 0.0
        %391 = vmatpush.msra.mxu0 0.0
        %392 = vmatpush.msra.mxu0 0.0
        %393 = vmatpush.msra.mxu0 0.0
        %394 = vmatpush.msra.mxu0 0.0
        %395 = vmatpush.msra.mxu0 0.0
        %396 = vmatpush.msra.mxu0 0.0
        %397 = vmatpush.msra.mxu0 0.0
        %398 = vmatpush.msra.mxu0 0.0
        %399 = vmatpush.msra.mxu0 0.0
        %400 = vmatpush.msra.mxu0 %v357
        %401 = vmatpush.msra.mxu0 %v354
        %402 = vmatpush.msra.mxu0 %v351
        %403 = vmatpush.msra.mxu0 %v348
        %404 = vmatmul.f32.gmra.mxu0 %v366
        %v405 = vpop.f32.mrf.mxu0
        %v406 = vadd.f32 %v362, %v405
        %407 = vdwg.mxu0
        %v410 = vrot.slane %v406, 4
        %v411 = vsel %vm296, %v386, %v410
        %413 = vst [vmem:[%s245] sm:$0xff] %v411
        %s414 = scalar_lea.vmem %s218, 8 [#allocation2]
        %v415 = vld [vmem:[%s414] sm:$0xff]
        %417 = vst [vmem:[#allocation1] ss:$2 sm:$0xff] %v415
        %v418 = vld.sshfl [vmem:[#allocation1] sm:$0xff pattern:$0x75316420]
        %v419 = vld.sshfl [vmem:[#allocation1 + $0x8] sm:$0xff pattern:$0x75316420]
        %v420 = vsel %vm296, %v418, 0
        %v422 = vsel %vm296, %v419, 0
        %424 = vmatpush.msra.mxu0 0.0
        %425 = vmatpush.msra.mxu0 0.0
        %426 = vmatpush.msra.mxu0 0.0
        %427 = vmatpush.msra.mxu0 0.0
        %428 = vmatpush.msra.mxu0 0.0
        %429 = vmatpush.msra.mxu0 0.0
        %430 = vmatpush.msra.mxu0 0.0
        %431 = vmatpush.msra.mxu0 0.0
        %432 = vmatpush.msra.mxu0 0.0
        %433 = vmatpush.msra.mxu0 0.0
        %434 = vmatpush.msra.mxu0 0.0
        %435 = vmatpush.msra.mxu0 0.0
        %436 = vmatpush.msra.mxu0 0.0
        %437 = vmatpush.msra.mxu0 0.0
        %438 = vmatpush.msra.mxu0 0.0
        %439 = vmatpush.msra.mxu0 %v420
        %440 = vmatmul.f32.gmra.mxu0 %v285
        %v441 = vpop.f32.mrf.mxu0
        %v442 = vadd.f32 %v262, %v441
        %443 = vmatmul.f32.gmra.mxu0 %v288
        %v444 = vpop.f32.mrf.mxu0
        %v445 = vadd.f32 %v267, %v444
        %446 = vmatmul.f32.gmra.mxu0 %v291
        %v447 = vpop.f32.mrf.mxu0
        %v448 = vadd.f32 %v272, %v447
        %449 = vmatmul.f32.gmra.mxu0 %v294
        %v450 = vpop.f32.mrf.mxu0
        %v451 = vadd.f32 %v277, %v450
        %452 = vdwg.mxu0
        %453 = vmatpush.msra.mxu0 0.0
        %454 = vmatpush.msra.mxu0 0.0
        %455 = vmatpush.msra.mxu0 0.0
        %456 = vmatpush.msra.mxu0 0.0
        %457 = vmatpush.msra.mxu0 0.0
        %458 = vmatpush.msra.mxu0 0.0
        %459 = vmatpush.msra.mxu0 0.0
        %460 = vmatpush.msra.mxu0 0.0
        %461 = vmatpush.msra.mxu0 0.0
        %462 = vmatpush.msra.mxu0 0.0
        %463 = vmatpush.msra.mxu0 0.0
        %464 = vmatpush.msra.mxu0 0.0
        %465 = vmatpush.msra.mxu0 0.0
        %466 = vmatpush.msra.mxu0 0.0
        %467 = vmatpush.msra.mxu0 0.0
        %468 = vmatpush.msra.mxu0 %v422
        %469 = vmatmul.f32.gmra.mxu0 %v285
        %v470 = vpop.f32.mrf.mxu0
        %v471 = vadd.f32 %v262, %v470
        %472 = vmatmul.f32.gmra.mxu0 %v288
        %v473 = vpop.f32.mrf.mxu0
        %v474 = vadd.f32 %v267, %v473
        %475 = vmatmul.f32.gmra.mxu0 %v291
        %v476 = vpop.f32.mrf.mxu0
        %v477 = vadd.f32 %v272, %v476
        %478 = vmatmul.f32.gmra.mxu0 %v294
        %v479 = vpop.f32.mrf.mxu0
        %v480 = vadd.f32 %v277, %v479
        %481 = vdwg.mxu0
        %482 = vmatpush.msra.mxu0 0.0
        %483 = vmatpush.msra.mxu0 0.0
        %484 = vmatpush.msra.mxu0 0.0
        %485 = vmatpush.msra.mxu0 0.0
        %486 = vmatpush.msra.mxu0 0.0
        %487 = vmatpush.msra.mxu0 0.0
        %488 = vmatpush.msra.mxu0 0.0
        %489 = vmatpush.msra.mxu0 0.0
        %490 = vmatpush.msra.mxu0 0.0
        %491 = vmatpush.msra.mxu0 0.0
        %492 = vmatpush.msra.mxu0 0.0
        %493 = vmatpush.msra.mxu0 0.0
        %494 = vmatpush.msra.mxu0 %v451
        %495 = vmatpush.msra.mxu0 %v448
        %496 = vmatpush.msra.mxu0 %v445
        %497 = vmatpush.msra.mxu0 %v442
        %498 = vmatmul.f32.gmra.mxu0 %v366
        %v499 = vpop.f32.mrf.mxu0
        %v500 = vadd.f32 %v362, %v499
        %501 = vdwg.mxu0
        %502 = vmatpush.msra.mxu0 0.0
        %503 = vmatpush.msra.mxu0 0.0
        %504 = vmatpush.msra.mxu0 0.0
        %505 = vmatpush.msra.mxu0 0.0
        %506 = vmatpush.msra.mxu0 0.0
        %507 = vmatpush.msra.mxu0 0.0
        %508 = vmatpush.msra.mxu0 0.0
        %509 = vmatpush.msra.mxu0 0.0
        %510 = vmatpush.msra.mxu0 0.0
        %511 = vmatpush.msra.mxu0 0.0
        %512 = vmatpush.msra.mxu0 0.0
        %513 = vmatpush.msra.mxu0 0.0
        %514 = vmatpush.msra.mxu0 %v480
        %515 = vmatpush.msra.mxu0 %v477
        %516 = vmatpush.msra.mxu0 %v474
        %517 = vmatpush.msra.mxu0 %v471
        %518 = vmatmul.f32.gmra.mxu0 %v366
        %v519 = vpop.f32.mrf.mxu0
        %v520 = vadd.f32 %v362, %v519
        %521 = vdwg.mxu0
        %v524 = vrot.slane %v520, 4
        %v525 = vsel %vm296, %v500, %v524
        %s527 = scalar_lea.vmem %s245, 8 [#allocation5]
        %528 = vst [vmem:[%s527] sm:$0xff] %v525
        %s529 = scalar_lea.vmem %s218, 16 [#allocation2]
        %v530 = vld [vmem:[%s529] sm:$0xff]
        %532 = vst [vmem:[#allocation1] ss:$2 sm:$0xff] %v530
        %v533 = vld.sshfl [vmem:[#allocation1] sm:$0xff pattern:$0x75316420]
        %v534 = vld.sshfl [vmem:[#allocation1 + $0x8] sm:$0xff pattern:$0x75316420]
        %v535 = vsel %vm296, %v533, 0
        %v537 = vsel %vm296, %v534, 0
        %539 = vmatpush.msra.mxu0 0.0
        %540 = vmatpush.msra.mxu0 0.0
        %541 = vmatpush.msra.mxu0 0.0
        %542 = vmatpush.msra.mxu0 0.0
        %543 = vmatpush.msra.mxu0 0.0
        %544 = vmatpush.msra.mxu0 0.0
        %545 = vmatpush.msra.mxu0 0.0
        %546 = vmatpush.msra.mxu0 0.0
        %547 = vmatpush.msra.mxu0 0.0
        %548 = vmatpush.msra.mxu0 0.0
        %549 = vmatpush.msra.mxu0 0.0
        %550 = vmatpush.msra.mxu0 0.0
        %551 = vmatpush.msra.mxu0 0.0
        %552 = vmatpush.msra.mxu0 0.0
        %553 = vmatpush.msra.mxu0 0.0
        %554 = vmatpush.msra.mxu0 %v535
        %555 = vmatmul.f32.gmra.mxu0 %v285
        %v556 = vpop.f32.mrf.mxu0
        %v557 = vadd.f32 %v262, %v556
        %558 = vmatmul.f32.gmra.mxu0 %v288
        %v559 = vpop.f32.mrf.mxu0
        %v560 = vadd.f32 %v267, %v559
        %561 = vmatmul.f32.gmra.mxu0 %v291
        %v562 = vpop.f32.mrf.mxu0
        %v563 = vadd.f32 %v272, %v562
        %564 = vmatmul.f32.gmra.mxu0 %v294
        %v565 = vpop.f32.mrf.mxu0
        %v566 = vadd.f32 %v277, %v565
        %567 = vdwg.mxu0
        %568 = vmatpush.msra.mxu0 0.0
        %569 = vmatpush.msra.mxu0 0.0
        %570 = vmatpush.msra.mxu0 0.0
        %571 = vmatpush.msra.mxu0 0.0
        %572 = vmatpush.msra.mxu0 0.0
        %573 = vmatpush.msra.mxu0 0.0
        %574 = vmatpush.msra.mxu0 0.0
        %575 = vmatpush.msra.mxu0 0.0
        %576 = vmatpush.msra.mxu0 0.0
        %577 = vmatpush.msra.mxu0 0.0
        %578 = vmatpush.msra.mxu0 0.0
        %579 = vmatpush.msra.mxu0 0.0
        %580 = vmatpush.msra.mxu0 0.0
        %581 = vmatpush.msra.mxu0 0.0
        %582 = vmatpush.msra.mxu0 0.0
        %583 = vmatpush.msra.mxu0 %v537
        %584 = vmatmul.f32.gmra.mxu0 %v285
        %v585 = vpop.f32.mrf.mxu0
        %v586 = vadd.f32 %v262, %v585
        %587 = vmatmul.f32.gmra.mxu0 %v288
        %v588 = vpop.f32.mrf.mxu0
        %v589 = vadd.f32 %v267, %v588
        %590 = vmatmul.f32.gmra.mxu0 %v291
        %v591 = vpop.f32.mrf.mxu0
        %v592 = vadd.f32 %v272, %v591
        %593 = vmatmul.f32.gmra.mxu0 %v294
        %v594 = vpop.f32.mrf.mxu0
        %v595 = vadd.f32 %v277, %v594
        %596 = vdwg.mxu0
        %597 = vmatpush.msra.mxu0 0.0
        %598 = vmatpush.msra.mxu0 0.0
        %599 = vmatpush.msra.mxu0 0.0
        %600 = vmatpush.msra.mxu0 0.0
        %601 = vmatpush.msra.mxu0 0.0
        %602 = vmatpush.msra.mxu0 0.0
        %603 = vmatpush.msra.mxu0 0.0
        %604 = vmatpush.msra.mxu0 0.0
        %605 = vmatpush.msra.mxu0 0.0
        %606 = vmatpush.msra.mxu0 0.0
        %607 = vmatpush.msra.mxu0 0.0
        %608 = vmatpush.msra.mxu0 0.0
        %609 = vmatpush.msra.mxu0 %v566
        %610 = vmatpush.msra.mxu0 %v563
        %611 = vmatpush.msra.mxu0 %v560
        %612 = vmatpush.msra.mxu0 %v557
        %613 = vmatmul.f32.gmra.mxu0 %v366
        %v614 = vpop.f32.mrf.mxu0
        %v615 = vadd.f32 %v362, %v614
        %616 = vdwg.mxu0
        %617 = vmatpush.msra.mxu0 0.0
        %618 = vmatpush.msra.mxu0 0.0
        %619 = vmatpush.msra.mxu0 0.0
        %620 = vmatpush.msra.mxu0 0.0
        %621 = vmatpush.msra.mxu0 0.0
        %622 = vmatpush.msra.mxu0 0.0
        %623 = vmatpush.msra.mxu0 0.0
        %624 = vmatpush.msra.mxu0 0.0
        %625 = vmatpush.msra.mxu0 0.0
        %626 = vmatpush.msra.mxu0 0.0
        %627 = vmatpush.msra.mxu0 0.0
        %628 = vmatpush.msra.mxu0 0.0
        %629 = vmatpush.msra.mxu0 %v595
        %630 = vmatpush.msra.mxu0 %v592
        %631 = vmatpush.msra.mxu0 %v589
        %632 = vmatpush.msra.mxu0 %v586
        %633 = vmatmul.f32.gmra.mxu0 %v366
        %v634 = vpop.f32.mrf.mxu0
        %v635 = vadd.f32 %v362, %v634
        %636 = vdwg.mxu0
        %v639 = vrot.slane %v635, 4
        %v640 = vsel %vm296, %v615, %v639
        %s642 = scalar_lea.vmem %s245, 16 [#allocation5]
        %643 = vst [vmem:[%s642] sm:$0xff] %v640
        %s644 = scalar_lea.vmem %s218, 24 [#allocation2]
        %v645 = vld [vmem:[%s644] sm:$0xff]
        %647 = vst [vmem:[#allocation1] ss:$2 sm:$0xff] %v645
        %v648 = vld.sshfl [vmem:[#allocation1] sm:$0xff pattern:$0x75316420]
        %v649 = vld.sshfl [vmem:[#allocation1 + $0x8] sm:$0xff pattern:$0x75316420]
        %v650 = vsel %vm296, %v648, 0
        %v652 = vsel %vm296, %v649, 0
        %654 = vmatpush.msra.mxu0 0.0
        %655 = vmatpush.msra.mxu0 0.0
        %656 = vmatpush.msra.mxu0 0.0
        %657 = vmatpush.msra.mxu0 0.0
        %658 = vmatpush.msra.mxu0 0.0
        %659 = vmatpush.msra.mxu0 0.0
        %660 = vmatpush.msra.mxu0 0.0
        %661 = vmatpush.msra.mxu0 0.0
        %662 = vmatpush.msra.mxu0 0.0
        %663 = vmatpush.msra.mxu0 0.0
        %664 = vmatpush.msra.mxu0 0.0
        %665 = vmatpush.msra.mxu0 0.0
        %666 = vmatpush.msra.mxu0 0.0
        %667 = vmatpush.msra.mxu0 0.0
        %668 = vmatpush.msra.mxu0 0.0
        %669 = vmatpush.msra.mxu0 %v650
        %670 = vmatmul.f32.gmra.mxu0 %v285
        %v671 = vpop.f32.mrf.mxu0
        %v672 = vadd.f32 %v262, %v671
        %673 = vmatmul.f32.gmra.mxu0 %v288
        %v674 = vpop.f32.mrf.mxu0
        %v675 = vadd.f32 %v267, %v674
        %676 = vmatmul.f32.gmra.mxu0 %v291
        %v677 = vpop.f32.mrf.mxu0
        %v678 = vadd.f32 %v272, %v677
        %679 = vmatmul.f32.gmra.mxu0 %v294
        %v680 = vpop.f32.mrf.mxu0
        %v681 = vadd.f32 %v277, %v680
        %682 = vdwg.mxu0
        %683 = vmatpush.msra.mxu0 0.0
        %684 = vmatpush.msra.mxu0 0.0
        %685 = vmatpush.msra.mxu0 0.0
        %686 = vmatpush.msra.mxu0 0.0
        %687 = vmatpush.msra.mxu0 0.0
        %688 = vmatpush.msra.mxu0 0.0
        %689 = vmatpush.msra.mxu0 0.0
        %690 = vmatpush.msra.mxu0 0.0
        %691 = vmatpush.msra.mxu0 0.0
        %692 = vmatpush.msra.mxu0 0.0
        %693 = vmatpush.msra.mxu0 0.0
        %694 = vmatpush.msra.mxu0 0.0
        %695 = vmatpush.msra.mxu0 0.0
        %696 = vmatpush.msra.mxu0 0.0
        %697 = vmatpush.msra.mxu0 0.0
        %698 = vmatpush.msra.mxu0 %v652
        %699 = vmatmul.f32.gmra.mxu0 %v285
        %v700 = vpop.f32.mrf.mxu0
        %v701 = vadd.f32 %v262, %v700
        %702 = vmatmul.f32.gmra.mxu0 %v288
        %v703 = vpop.f32.mrf.mxu0
        %v704 = vadd.f32 %v267, %v703
        %705 = vmatmul.f32.gmra.mxu0 %v291
        %v706 = vpop.f32.mrf.mxu0
        %v707 = vadd.f32 %v272, %v706
        %708 = vmatmul.f32.gmra.mxu0 %v294
        %v709 = vpop.f32.mrf.mxu0
        %v710 = vadd.f32 %v277, %v709
        %711 = vdwg.mxu0
        %712 = vmatpush.msra.mxu0 0.0
        %713 = vmatpush.msra.mxu0 0.0
        %714 = vmatpush.msra.mxu0 0.0
        %715 = vmatpush.msra.mxu0 0.0
        %716 = vmatpush.msra.mxu0 0.0
        %717 = vmatpush.msra.mxu0 0.0
        %718 = vmatpush.msra.mxu0 0.0
        %719 = vmatpush.msra.mxu0 0.0
        %720 = vmatpush.msra.mxu0 0.0
        %721 = vmatpush.msra.mxu0 0.0
        %722 = vmatpush.msra.mxu0 0.0
        %723 = vmatpush.msra.mxu0 0.0
        %724 = vmatpush.msra.mxu0 %v681
        %725 = vmatpush.msra.mxu0 %v678
        %726 = vmatpush.msra.mxu0 %v675
        %727 = vmatpush.msra.mxu0 %v672
        %728 = vmatmul.f32.gmra.mxu0 %v366
        %v729 = vpop.f32.mrf.mxu0
        %v730 = vadd.f32 %v362, %v729
        %731 = vdwg.mxu0
        %732 = vmatpush.msra.mxu0 0.0
        %733 = vmatpush.msra.mxu0 0.0
        %734 = vmatpush.msra.mxu0 0.0
        %735 = vmatpush.msra.mxu0 0.0
        %736 = vmatpush.msra.mxu0 0.0
        %737 = vmatpush.msra.mxu0 0.0
        %738 = vmatpush.msra.mxu0 0.0
        %739 = vmatpush.msra.mxu0 0.0
        %740 = vmatpush.msra.mxu0 0.0
        %741 = vmatpush.msra.mxu0 0.0
        %742 = vmatpush.msra.mxu0 0.0
        %743 = vmatpush.msra.mxu0 0.0
        %744 = vmatpush.msra.mxu0 %v710
        %745 = vmatpush.msra.mxu0 %v707
        %746 = vmatpush.msra.mxu0 %v704
        %747 = vmatpush.msra.mxu0 %v701
        %748 = vmatmul.f32.gmra.mxu0 %v366
        %v749 = vpop.f32.mrf.mxu0
        %v750 = vadd.f32 %v362, %v749
        %751 = vdwg.mxu0
        %v754 = vrot.slane %v750, 4
        %v755 = vsel %vm296, %v730, %v754
        %s757 = scalar_lea.vmem %s245, 24 [#allocation5]
        %758 = vst [vmem:[%s757] sm:$0xff] %v755
        %s759 = sand.u32 %s140, 1
        %s760 = scalar_lea.sflag [#allocation4], %s759
        %s761 = sand.u32 %s140, 1
        %s762 = smul.addr %s761, 32
        %s763 = scalar_lea.vmem [#allocation5], %s762
        // Predicated region
        $region45: #{tpu_custom_call.1} parent=39 // pred_check
          %p764 = pneg %p150
        $region46: #{tpu_custom_call.1} parent=39 // pred_check_branch
          %766 = sbr.rel (%p764) target = $region48
        $region47: #{tpu_custom_call.1} parent=39 // pred_region
          %s767 = smul.u32 4, %s22
          %769 = vsyncadd %s760, 0
          %s770 = smul.addr %s767, 2
          %s771 = smul.addr %s770, 4
          %s772 = scalar_lea.hbm %s5, %s771
          %s773 = sshll.u32 %s763, 4
          %s774 = int_to_ptr.vmem [resolvable:$true] %s773
          %s775 = sshll.u32 %s772, 4
          %s776 = int_to_ptr.hbm [resolvable:$true] %s775
          %781 = dma.vmem_to_hbm [thread:$0]  %s774, 512, %s776, %s760, 128, 128, 8
        $region48: #{tpu_custom_call.1} parent=39 // pred_fallthru
          _
      $region40: #{tpu_custom_call.1} parent=5 // pred_fallthru
        _
      %p782 = scmp.le.s32.totalorder 2, %s17
      // Predicated region
      $region49: #{tpu_custom_call.1} parent=5 // pred_check
        %p783 = pneg %p782
      $region50: #{tpu_custom_call.1} parent=5 // pred_check_branch
        %785 = sbr.rel (%p783) target = $region52
      $region51: #{tpu_custom_call.1} parent=5 // pred_region
        %s786 = ssub.s32 %s17, 2
        // Predicated region
        $region53: #{tpu_custom_call.1} parent=51 // pred_check
          %p787 = pneg %p156
        $region54: #{tpu_custom_call.1} parent=51 // pred_check_branch
          %789 = sbr.rel (%p787) target = $region56
        $region55: #{tpu_custom_call.1} parent=51 // pred_region
          %s790 = sand.u32 %s141, 1
          %s791 = scalar_lea.sflag [#allocation4], %s790
          %s792 = sand.u32 %s141, 1
          %s793 = smul.addr %s792, 32
          %s794 = scalar_lea.vmem [#allocation5], %s793
          %796 = dma.done %s791, 512
        $region56: #{tpu_custom_call.1} parent=51 // pred_fallthru
          _
      $region52: #{tpu_custom_call.1} parent=5 // pred_fallthru
        _
    $region6: #{tpu_custom_call.1} parent=1 // loop_footer
      %s21 = sadd.s32 1, %s17
    $region7: #{tpu_custom_call.1} parent=1 // loop_footer_branch
      %16 = sbr.rel target = $region3
    $region8: #{tpu_custom_call.1} parent=1 // loop_exit
      _
    %797 = vsyncpa [#allocation3], 1
    %s798 = scalar_lea.sflag [#allocation3], 1
    %799 = vsyncpa %s798, 1
    %800 = vsyncpa [#allocation4], 1
    %s801 = scalar_lea.sflag [#allocation4], 1
    %802 = vsyncpa %s801, 1

</llo_original>
